<compile_context>
chip_gen: v7x
topology: tpu7x:2x2x1
jax: 0.10.0
libtpu: 0.0.40
codegen_flags: <defaults>
</compile_context>

<pallas_src>
import jax
import jax.numpy as jnp
from jax.experimental import pallas as pl
from jax.experimental.pallas import tpu as pltpu


def _round_up(x, m):
    return ((x + m - 1) // m) * m


# ----------------------------------------------------------------------------
# Kernel
# ----------------------------------------------------------------------------
def _critic_kernel(sa_ref,
                   w14_ref, b14_ref,     # fused layer-1 of both heads
                   w2_ref, b2_ref,       # Q1 layer-2
                   w5_ref, b5_ref,       # Q2 layer-2
                   w36_ref, b36_ref,     # fused output layer (q1 -> col0, q2 -> col1)
                   q_ref):
    cdt = w14_ref.dtype                  # compute dtype for MXU inputs (bf16)
    hp = w2_ref.shape[0]                 # padded hidden dim

    sa = sa_ref[...].astype(cdt)

    # Fused layer 1 of both heads: [bt, Dp] @ [Dp, 2Hp]
    y = jnp.dot(sa, w14_ref[...], preferred_element_type=jnp.float32) + b14_ref[...]
    y = jnp.maximum(y, 0.0)
    h = y[:, :hp].astype(cdt)            # Q1 hidden
    g = y[:, hp:].astype(cdt)            # Q2 hidden

    # Layer 2 (separate weights per head).
    h2 = jnp.maximum(
        jnp.dot(h, w2_ref[...], preferred_element_type=jnp.float32) + b2_ref[...], 0.0)
    g2 = jnp.maximum(
        jnp.dot(g, w5_ref[...], preferred_element_type=jnp.float32) + b5_ref[...], 0.0)

    # Fused output layer: [bt, 2Hp] @ [2Hp, 128] -> lane-dense slab,
    # column 0 = q1, column 1 = q2, remaining columns are exactly zero.
    hg = jnp.concatenate([h2.astype(cdt), g2.astype(cdt)], axis=-1)
    q_ref[...] = (jnp.dot(hg, w36_ref[...], preferred_element_type=jnp.float32)
                  + b36_ref[...])


# ----------------------------------------------------------------------------
# Wrapper
# ----------------------------------------------------------------------------
def critic_forward(sa, kparams, *, batch_tile=None):
    """sa: [B, D] float32.  kparams: dict from pack_critic_params()."""
    B, D = sa.shape
    Dp = kparams["w14"].shape[0]
    Hp = kparams["w2"].shape[0]
    assert D <= Dp

    if batch_tile is None:
        # Large MXU-friendly batch tile; 8-aligned.  For big batches this gives
        # >= 2 parallel grid steps (keeps both v7x TensorCores busy).
        batch_tile = min(256, _round_up(B, 8))
    batch_tile = max(8, _round_up(batch_tile, 8))
    Bp = _round_up(B, batch_tile)

    # Zero-pad batch rows and feature lanes (padded lanes contribute exactly 0).
    sa_p = jnp.pad(sa.astype(jnp.float32), ((0, Bp - B), (0, Dp - D)))

    bcast = lambda i: (0, 0)             # weights/biases: same block every step
    row = lambda i: (i, 0)               # activations/outputs: tile the batch axis

    in_specs = [
        pl.BlockSpec((batch_tile, Dp), row),                            # sa
        pl.BlockSpec((Dp, 2 * Hp), bcast), pl.BlockSpec((1, 2 * Hp), bcast),  # l1|l4
        pl.BlockSpec((Hp, Hp), bcast),     pl.BlockSpec((1, Hp), bcast),      # l2
        pl.BlockSpec((Hp, Hp), bcast),     pl.BlockSpec((1, Hp), bcast),      # l5
        pl.BlockSpec((2 * Hp, 128), bcast), pl.BlockSpec((1, 128), bcast),    # l3|l6
    ]
    out_specs = pl.BlockSpec((batch_tile, 128), row)
    out_shape = jax.ShapeDtypeStruct((Bp, 128), jnp.float32)

    q_slab = pl.pallas_call(
        _critic_kernel,
        grid_spec=pltpu.PrefetchScalarGridSpec(
            num_scalar_prefetch=0,
            grid=(Bp // batch_tile,),
            in_specs=in_specs,
            out_specs=out_specs,
        ),
        out_shape=out_shape,
        compiler_params=pltpu.CompilerParams(
            dimension_semantics=("parallel",)),
    )(
        sa_p,
        kparams["w14"], kparams["b14"],
        kparams["w2"], kparams["b2"],
        kparams["w5"], kparams["b5"],
        kparams["w36"], kparams["b36"],
    )

    q1 = q_slab[:B, 0:1]
    q2 = q_slab[:B, 1:2]
    return q1, q2


# ----------------------------------------------------------------------------
# Parameter init (matches the PyTorch module) and kernel-layout packing
# ----------------------------------------------------------------------------
def init_critic_params(key, state_action_features_dim, hidden_dim=256):
    """Orthogonal weights (PyTorch shape (out,in), stored transposed as (in,out)),
    zero biases."""
    ortho = jax.nn.initializers.orthogonal()
    ks = jax.random.split(key, 6)
    D, H = state_action_features_dim, hidden_dim

    def lin(k, fan_in, fan_out):
        w_out_in = ortho(k, (fan_out, fan_in), jnp.float32)
        return w_out_in.T, jnp.zeros((1, fan_out), jnp.float32)

    w1, b1 = lin(ks[0], D, H)
    w2, b2 = lin(ks[1], H, H)
    w3, b3 = lin(ks[2], H, 1)
    w4, b4 = lin(ks[3], D, H)
    w5, b5 = lin(ks[4], H, H)
    w6, b6 = lin(ks[5], H, 1)
    return dict(w1=w1, b1=b1, w2=w2, b2=b2, w3=w3, b3=b3,
                w4=w4, b4=b4, w5=w5, b5=b5, w6=w6, b6=b6)


def pack_critic_params(p, *, compute_dtype=jnp.bfloat16):
    """Pack / pad per-layer (in,out) params into the fused kernel layout."""
    D, H = p["w1"].shape
    Dp = _round_up(D, 128)
    Hp = _round_up(H, 128)

    # Fused layer 1: [Dp, 2*Hp], cols [0:Hp) -> Q1 (w1), cols [Hp:2Hp) -> Q2 (w4).
    w14 = jnp.zeros((Dp, 2 * Hp), jnp.float32)
    w14 = w14.at[:D, :H].set(p["w1"]).at[:D, Hp:Hp + H].set(p["w4"])
    b14 = jnp.zeros((1, 2 * Hp), jnp.float32)
    b14 = b14.at[:, :H].set(p["b1"]).at[:, Hp:Hp + H].set(p["b4"])

    def pad_sq(w, b):
        wp = jnp.zeros((Hp, Hp), jnp.float32).at[:H, :H].set(w)
        bp = jnp.zeros((1, Hp), jnp.float32).at[:, :H].set(b)
        return wp, bp

    w2, b2 = pad_sq(p["w2"], p["b2"])
    w5, b5 = pad_sq(p["w5"], p["b5"])

    # Fused output layer: [2*Hp, 128]; q1 lives in column 0, q2 in column 1.
    w36 = jnp.zeros((2 * Hp, 128), jnp.float32)
    w36 = w36.at[:H, 0:1].set(p["w3"]).at[Hp:Hp + H, 1:2].set(p["w6"])
    b36 = jnp.zeros((1, 128), jnp.float32)
    b36 = b36.at[:, 0:1].set(p["b3"]).at[:, 1:2].set(p["b6"])

    wdt = compute_dtype
    return dict(
        w14=w14.astype(wdt), b14=b14,
        w2=w2.astype(wdt), b2=b2,
        w5=w5.astype(wdt), b5=b5,
        w36=w36.astype(wdt), b36=b36,
    )


# ----------------------------------------------------------------------------
# Pure-JAX reference (mirrors the bf16-input / f32-accumulate MXU path)
# ----------------------------------------------------------------------------
def critic_forward_ref(sa, p, compute_dtype=jnp.bfloat16):
    cdt = compute_dtype

    def lin(x, w, b):
        return jnp.dot(x.astype(cdt), w.astype(cdt),
                       preferred_element_type=jnp.float32) + b

    relu = lambda x: jnp.maximum(x, 0.0)
    h = relu(lin(sa, p["w1"], p["b1"]))
    h = relu(lin(h, p["w2"], p["b2"]))
    q1 = lin(h, p["w3"], p["b3"])
    g = relu(lin(sa, p["w4"], p["b4"]))
    g = relu(lin(g, p["w5"], p["b5"]))
    q2 = lin(g, p["w6"], p["b6"])
    return q1, q2


if __name__ == "__main__":
    key = jax.random.PRNGKey(0)
    k_param, k_input = jax.random.split(key)

    B = 16                      # batch
    D = 32                      # state_action_features_dim (small, synthetic)
    H = 32                      # hidden_dim (small, synthetic)

    params = init_critic_params(k_param, D, hidden_dim=H)
    kparams = pack_critic_params(params, compute_dtype=jnp.bfloat16)
    sa = jax.random.normal(k_input, (B, D), dtype=jnp.float32)

    q1, q2 = critic_forward(sa, kparams)
    q1 = jax.block_until_ready(q1)
    q2 = jax.block_until_ready(q2)

    # sanity check against a pure-JAX reference (same bf16/f32-accum math)
    q1_ref, q2_ref = critic_forward_ref(sa, params, compute_dtype=jnp.bfloat16)
    assert q1.shape == (B, 1) and q2.shape == (B, 1)
    assert jnp.allclose(q1, q1_ref, atol=2e-2, rtol=2e-2)
    assert jnp.allclose(q2, q2_ref, atol=2e-2, rtol=2e-2)

    print("KERNEL_OK")
</pallas_src>

<mosaic_0001>
module attributes {stable_mosaic.version = 11 : i64} {
  func.func @_critic_kernel(%arg0: i32, %arg1: memref<16x128xf32, #tpu.memory_space<vmem>>, %arg2: memref<128x256xbf16, #tpu.memory_space<vmem>>, %arg3: memref<1x256xf32, #tpu.memory_space<vmem>>, %arg4: memref<128x128xbf16, #tpu.memory_space<vmem>>, %arg5: memref<1x128xf32, #tpu.memory_space<vmem>>, %arg6: memref<128x128xbf16, #tpu.memory_space<vmem>>, %arg7: memref<1x128xf32, #tpu.memory_space<vmem>>, %arg8: memref<256x128xbf16, #tpu.memory_space<vmem>>, %arg9: memref<1x128xf32, #tpu.memory_space<vmem>>, %arg10: memref<16x128xf32, #tpu.memory_space<vmem>>) attributes {dimension_semantics = [#tpu.dimension_semantics<parallel>], iteration_bounds = array<i64: 1>, scalar_prefetch = 0 : i64, scratch_operands = 0 : i64, tpu.core_type = #tpu.core_type<tc>, window_params = [{transform_indices = @transform_0, window_bounds = array<i64: 16, 128>}, {pipeline_mode = #tpu.pipeline_mode<synchronous>, transform_indices = @transform_1, window_bounds = array<i64: 128, 256>}, {pipeline_mode = #tpu.pipeline_mode<synchronous>, transform_indices = @transform_2, window_bounds = array<i64: 1, 256>}, {pipeline_mode = #tpu.pipeline_mode<synchronous>, transform_indices = @transform_3, window_bounds = array<i64: 128, 128>}, {pipeline_mode = #tpu.pipeline_mode<synchronous>, transform_indices = @transform_4, window_bounds = array<i64: 1, 128>}, {pipeline_mode = #tpu.pipeline_mode<synchronous>, transform_indices = @transform_5, window_bounds = array<i64: 128, 128>}, {pipeline_mode = #tpu.pipeline_mode<synchronous>, transform_indices = @transform_6, window_bounds = array<i64: 1, 128>}, {pipeline_mode = #tpu.pipeline_mode<synchronous>, transform_indices = @transform_7, window_bounds = array<i64: 256, 128>}, {pipeline_mode = #tpu.pipeline_mode<synchronous>, transform_indices = @transform_8, window_bounds = array<i64: 1, 128>}, {transform_indices = @transform_9, window_bounds = array<i64: 16, 128>}]} {
    %c0 = arith.constant 0 : index
    %c0_0 = arith.constant 0 : index
    %0 = vector.load %arg1[%c0, %c0_0] : memref<16x128xf32, #tpu.memory_space<vmem>>, vector<16x128xf32>
    %1 = arith.truncf %0 : vector<16x128xf32> to vector<16x128xbf16>
    %c0_1 = arith.constant 0 : index
    %c0_2 = arith.constant 0 : index
    %2 = vector.load %arg2[%c0_1, %c0_2] : memref<128x256xbf16, #tpu.memory_space<vmem>>, vector<128x256xbf16>
    %cst = arith.constant dense<0.000000e+00> : vector<16x256xf32>
    %3 = tpu.matmul %1, %2, %cst {dimension_numbers = #tpu.dot_dimension_numbers<[1], [0], [0], [1], [0, 0, 1, 1], [], []>} : vector<16x128xbf16>, vector<128x256xbf16>, vector<16x256xf32> -> vector<16x256xf32>
    %c0_3 = arith.constant 0 : index
    %c0_4 = arith.constant 0 : index
    %4 = vector.load %arg3[%c0_3, %c0_4] : memref<1x256xf32, #tpu.memory_space<vmem>>, vector<1x256xf32>
    %5 = vector.broadcast %4 : vector<1x256xf32> to vector<16x256xf32>
    %6 = arith.addf %3, %5 : vector<16x256xf32>
    %cst_5 = arith.constant 0.000000e+00 : f32
    %7 = vector.broadcast %cst_5 : f32 to vector<16x256xf32>
    %8 = arith.maximumf %6, %7 : vector<16x256xf32>
    %9 = vector.extract_strided_slice %8 {offsets = [0, 0], sizes = [16, 128], strides = [1, 1]} : vector<16x256xf32> to vector<16x128xf32>
    %10 = arith.truncf %9 : vector<16x128xf32> to vector<16x128xbf16>
    %11 = vector.extract_strided_slice %8 {offsets = [0, 128], sizes = [16, 128], strides = [1, 1]} : vector<16x256xf32> to vector<16x128xf32>
    %12 = arith.truncf %11 : vector<16x128xf32> to vector<16x128xbf16>
    %c0_6 = arith.constant 0 : index
    %c0_7 = arith.constant 0 : index
    %13 = vector.load %arg4[%c0_6, %c0_7] : memref<128x128xbf16, #tpu.memory_space<vmem>>, vector<128x128xbf16>
    %cst_8 = arith.constant dense<0.000000e+00> : vector<16x128xf32>
    %14 = tpu.matmul %10, %13, %cst_8 {dimension_numbers = #tpu.dot_dimension_numbers<[1], [0], [0], [1], [0, 0, 1, 1], [], []>} : vector<16x128xbf16>, vector<128x128xbf16>, vector<16x128xf32> -> vector<16x128xf32>
    %c0_9 = arith.constant 0 : index
    %c0_10 = arith.constant 0 : index
    %15 = vector.load %arg5[%c0_9, %c0_10] : memref<1x128xf32, #tpu.memory_space<vmem>>, vector<1x128xf32>
    %16 = vector.broadcast %15 : vector<1x128xf32> to vector<16x128xf32>
    %17 = arith.addf %14, %16 : vector<16x128xf32>
    %cst_11 = arith.constant 0.000000e+00 : f32
    %18 = vector.broadcast %cst_11 : f32 to vector<16x128xf32>
    %19 = arith.maximumf %17, %18 : vector<16x128xf32>
    %c0_12 = arith.constant 0 : index
    %c0_13 = arith.constant 0 : index
    %20 = vector.load %arg6[%c0_12, %c0_13] : memref<128x128xbf16, #tpu.memory_space<vmem>>, vector<128x128xbf16>
    %cst_14 = arith.constant dense<0.000000e+00> : vector<16x128xf32>
    %21 = tpu.matmul %12, %20, %cst_14 {dimension_numbers = #tpu.dot_dimension_numbers<[1], [0], [0], [1], [0, 0, 1, 1], [], []>} : vector<16x128xbf16>, vector<128x128xbf16>, vector<16x128xf32> -> vector<16x128xf32>
    %c0_15 = arith.constant 0 : index
    %c0_16 = arith.constant 0 : index
    %22 = vector.load %arg7[%c0_15, %c0_16] : memref<1x128xf32, #tpu.memory_space<vmem>>, vector<1x128xf32>
    %23 = vector.broadcast %22 : vector<1x128xf32> to vector<16x128xf32>
    %24 = arith.addf %21, %23 : vector<16x128xf32>
    %cst_17 = arith.constant 0.000000e+00 : f32
    %25 = vector.broadcast %cst_17 : f32 to vector<16x128xf32>
    %26 = arith.maximumf %24, %25 : vector<16x128xf32>
    %27 = arith.truncf %19 : vector<16x128xf32> to vector<16x128xbf16>
    %28 = arith.truncf %26 : vector<16x128xf32> to vector<16x128xbf16>
    %29 = tpu.concatenate %27, %28 in 1 : vector<16x128xbf16>, vector<16x128xbf16> -> vector<16x256xbf16>
    %c0_18 = arith.constant 0 : index
    %c0_19 = arith.constant 0 : index
    %30 = vector.load %arg8[%c0_18, %c0_19] : memref<256x128xbf16, #tpu.memory_space<vmem>>, vector<256x128xbf16>
    %cst_20 = arith.constant dense<0.000000e+00> : vector<16x128xf32>
    %31 = tpu.matmul %29, %30, %cst_20 {dimension_numbers = #tpu.dot_dimension_numbers<[1], [0], [0], [1], [0, 0, 1, 1], [], []>} : vector<16x256xbf16>, vector<256x128xbf16>, vector<16x128xf32> -> vector<16x128xf32>
    %c0_21 = arith.constant 0 : index
    %c0_22 = arith.constant 0 : index
    %32 = vector.load %arg9[%c0_21, %c0_22] : memref<1x128xf32, #tpu.memory_space<vmem>>, vector<1x128xf32>
    %33 = vector.broadcast %32 : vector<1x128xf32> to vector<16x128xf32>
    %34 = arith.addf %31, %33 : vector<16x128xf32>
    %c0_23 = arith.constant 0 : index
    %c0_24 = arith.constant 0 : index
    %35 = vector.load %arg10[%c0_23, %c0_24] : memref<16x128xf32, #tpu.memory_space<vmem>>, vector<16x128xf32>
    tpu.vector_store %arg10[%c0_23, %c0_24], %34 {strides = array<i32>} : memref<16x128xf32, #tpu.memory_space<vmem>>, vector<16x128xf32>,
    return
  }
  func.func @transform_0(%arg0: i32) -> (i32, i32) {
    %c0_i32 = arith.constant 0 : i32
    %c0_i32_0 = arith.constant 0 : i32
    return %arg0, %c0_i32 : i32, i32
  }
  func.func @transform_1(%arg0: i32) -> (i32, i32) {
    %c0_i32 = arith.constant 0 : i32
    %c0_i32_0 = arith.constant 0 : i32
    %c0_i32_1 = arith.constant 0 : i32
    return %c0_i32, %c0_i32_0 : i32, i32
  }
  func.func @transform_2(%arg0: i32) -> (i32, i32) {
    %c0_i32 = arith.constant 0 : i32
    %c0_i32_0 = arith.constant 0 : i32
    %c0_i32_1 = arith.constant 0 : i32
    return %c0_i32, %c0_i32_0 : i32, i32
  }
  func.func @transform_3(%arg0: i32) -> (i32, i32) {
    %c0_i32 = arith.constant 0 : i32
    %c0_i32_0 = arith.constant 0 : i32
    %c0_i32_1 = arith.constant 0 : i32
    return %c0_i32, %c0_i32_0 : i32, i32
  }
  func.func @transform_4(%arg0: i32) -> (i32, i32) {
    %c0_i32 = arith.constant 0 : i32
    %c0_i32_0 = arith.constant 0 : i32
    %c0_i32_1 = arith.constant 0 : i32
    return %c0_i32, %c0_i32_0 : i32, i32
  }
  func.func @transform_5(%arg0: i32) -> (i32, i32) {
    %c0_i32 = arith.constant 0 : i32
    %c0_i32_0 = arith.constant 0 : i32
    %c0_i32_1 = arith.constant 0 : i32
    return %c0_i32, %c0_i32_0 : i32, i32
  }
  func.func @transform_6(%arg0: i32) -> (i32, i32) {
    %c0_i32 = arith.constant 0 : i32
    %c0_i32_0 = arith.constant 0 : i32
    %c0_i32_1 = arith.constant 0 : i32
    return %c0_i32, %c0_i32_0 : i32, i32
  }
  func.func @transform_7(%arg0: i32) -> (i32, i32) {
    %c0_i32 = arith.constant 0 : i32
    %c0_i32_0 = arith.constant 0 : i32
    %c0_i32_1 = arith.constant 0 : i32
    return %c0_i32, %c0_i32_0 : i32, i32
  }
  func.func @transform_8(%arg0: i32) -> (i32, i32) {
    %c0_i32 = arith.constant 0 : i32
    %c0_i32_0 = arith.constant 0 : i32
    %c0_i32_1 = arith.constant 0 : i32
    return %c0_i32, %c0_i32_0 : i32, i32
  }
  func.func @transform_9(%arg0: i32) -> (i32, i32) {
    %c0_i32 = arith.constant 0 : i32
    %c0_i32_0 = arith.constant 0 : i32
    return %arg0, %c0_i32 : i32, i32
  }
}

</mosaic_0001>

<llo_original>
// kernel: tpu_custom_call.1
$region0: #{tpu_custom_call.1}
  #allocation0 [shape = 'u32[]', space=smem, size = 0x4, offset = 0x4, fixed_abs, tag = 'smem constant byte address 0x4 - core index']
  #allocation1 [shape = 'u32[144,128]{1,0:T(1,128)}', space=vmem, size = 0x12000, scoped, tag = 'internal scratch']
  %s0 = inlined_call_operand.hbm [shape: f32[16,128], index: 0, kind: input, shape index: {}]
  %s1 = inlined_call_operand.hbm [shape: bf16[128,256], index: 1, kind: input, shape index: {}]
  %s2 = inlined_call_operand.vmem [shape: f32[1,256], index: 2, kind: input, shape index: {}]
  %s3 = inlined_call_operand.hbm [shape: bf16[128,128], index: 3, kind: input, shape index: {}]
  %s4 = inlined_call_operand.vmem [shape: f32[1,128], index: 4, kind: input, shape index: {}]
  %s5 = inlined_call_operand.hbm [shape: bf16[128,128], index: 5, kind: input, shape index: {}]
  %s6 = inlined_call_operand.vmem [shape: f32[1,128], index: 6, kind: input, shape index: {}]
  %s7 = inlined_call_operand.hbm [shape: bf16[256,128], index: 7, kind: input, shape index: {}]
  %s8 = inlined_call_operand.vmem [shape: f32[1,128], index: 8, kind: input, shape index: {}]
  %s9 = inlined_call_operand.hbm [shape: f32[16,128], index: 9, kind: output, shape index: {}]
  %s10 = sld [smem:[#allocation0]]
  $region66: #{tpu_custom_call.1} parent=0
    _
  %s12 = ssub.s32 1, %s10
  %s13 = scalar_select 0, %s12, %s10
  $region1: #{tpu_custom_call.1} parent=0
    #allocation2 [shape = 'u8[8192]{0}', space=vmem, size = 0x2000, scoped, tag = 'input window, operand 0, single buffered']
    #allocation3 [shape = 's32[1]{0}', space=sflag, size = 0x4, scoped, tag = 'scoped memory for tpu_custom_call.1']
    #allocation4 [shape = 's32[1]{0}', space=sflag, size = 0x4, scoped, tag = 'scoped memory for tpu_custom_call.1']
    #allocation5 [shape = 'u8[65536]{0}', space=vmem, size = 0x10000, scoped, tag = 'input window, operand 1, single buffered']
    #allocation6 [shape = 's32[1]{0}', space=sflag, size = 0x4, scoped, tag = 'scoped memory for tpu_custom_call.1']
    #allocation7 [shape = 'u8[32768]{0}', space=vmem, size = 0x8000, scoped, tag = 'input window, operand 3, single buffered']
    #allocation8 [shape = 'u8[32768]{0}', space=vmem, size = 0x8000, scoped, tag = 'input window, operand 5, single buffered']
    #allocation9 [shape = 's32[1]{0}', space=sflag, size = 0x4, scoped, tag = 'scoped memory for tpu_custom_call.1']
    #allocation10 [shape = 'u8[65536]{0}', space=vmem, size = 0x10000, scoped, tag = 'input window, operand 7, single buffered']
    #allocation11 [shape = 'u8[8192]{0}', space=vmem, size = 0x2000, scoped, tag = 'output window, operand 0, single buffered']
    %14 = vsyncpa [#allocation3], 0
    %15 = vsyncpa [#allocation6], 0
    %16 = vsyncpa [#allocation9], 0
    %17 = vsyncpa [#allocation4], 0
    // Predicated region
    $region2: #{tpu_custom_call.1} parent=1 // pred_check
      _
    $region3: #{tpu_custom_call.1} parent=1 // pred_check_branch
      %19 = sbr.rel (0) target = $region5
    $region4: #{tpu_custom_call.1} parent=1 // pred_region
      %s21 = ssub.s32 256, 256
      %22 = vsyncadd [#allocation3], %s21
      %s23 = sshll.u32 [#allocation2], 4
      %s24 = int_to_ptr.vmem [resolvable:$true] %s23
      %29 = dma.hbm_to_vmem [thread:$0]  %s0, 256, %s24, [#allocation3], 128, 128, 8
    $region5: #{tpu_custom_call.1} parent=1 // pred_fallthru
      _
    // Predicated region
    $region6: #{tpu_custom_call.1} parent=1 // pred_check
      _
    $region7: #{tpu_custom_call.1} parent=1 // pred_check_branch
      %31 = sbr.rel (0) target = $region9
    $region8: #{tpu_custom_call.1} parent=1 // pred_region
      %s33 = ssub.s32 2048, 2048
      %34 = vsyncadd [#allocation6], %s33
      %s35 = sshll.u32 [#allocation5], 4
      %s36 = int_to_ptr.vmem [resolvable:$true] %s35
      %41 = dma.hbm_to_vmem [thread:$0]  %s1, 2048, %s36, [#allocation6], 128, 128, 8
    $region9: #{tpu_custom_call.1} parent=1 // pred_fallthru
      _
    // Predicated region
    $region10: #{tpu_custom_call.1} parent=1 // pred_check
      _
    $region11: #{tpu_custom_call.1} parent=1 // pred_check_branch
      %43 = sbr.rel (0) target = $region13
    $region12: #{tpu_custom_call.1} parent=1 // pred_region
      _
    $region13: #{tpu_custom_call.1} parent=1 // pred_fallthru
      _
    // Predicated region
    $region14: #{tpu_custom_call.1} parent=1 // pred_check
      _
    $region15: #{tpu_custom_call.1} parent=1 // pred_check_branch
      %45 = sbr.rel (0) target = $region17
    $region16: #{tpu_custom_call.1} parent=1 // pred_region
      %s47 = ssub.s32 1024, 1024
      %48 = vsyncadd [#allocation6], %s47
      %s49 = sshll.u32 [#allocation7], 4
      %s50 = int_to_ptr.vmem [resolvable:$true] %s49
      %55 = dma.hbm_to_vmem [thread:$0]  %s3, 1024, %s50, [#allocation6], 64, 64, 4
    $region17: #{tpu_custom_call.1} parent=1 // pred_fallthru
      _
    // Predicated region
    $region18: #{tpu_custom_call.1} parent=1 // pred_check
      _
    $region19: #{tpu_custom_call.1} parent=1 // pred_check_branch
      %57 = sbr.rel (0) target = $region21
    $region20: #{tpu_custom_call.1} parent=1 // pred_region
      _
    $region21: #{tpu_custom_call.1} parent=1 // pred_fallthru
      _
    // Predicated region
    $region22: #{tpu_custom_call.1} parent=1 // pred_check
      _
    $region23: #{tpu_custom_call.1} parent=1 // pred_check_branch
      %59 = sbr.rel (0) target = $region25
    $region24: #{tpu_custom_call.1} parent=1 // pred_region
      %s61 = ssub.s32 1024, 1024
      %62 = vsyncadd [#allocation9], %s61
      %s63 = sshll.u32 [#allocation8], 4
      %s64 = int_to_ptr.vmem [resolvable:$true] %s63
      %69 = dma.hbm_to_vmem [thread:$0]  %s5, 1024, %s64, [#allocation9], 64, 64, 4
    $region25: #{tpu_custom_call.1} parent=1 // pred_fallthru
      _
    // Predicated region
    $region26: #{tpu_custom_call.1} parent=1 // pred_check
      _
    $region27: #{tpu_custom_call.1} parent=1 // pred_check_branch
      %71 = sbr.rel (0) target = $region29
    $region28: #{tpu_custom_call.1} parent=1 // pred_region
      _
    $region29: #{tpu_custom_call.1} parent=1 // pred_fallthru
      _
    // Predicated region
    $region30: #{tpu_custom_call.1} parent=1 // pred_check
      _
    $region31: #{tpu_custom_call.1} parent=1 // pred_check_branch
      %73 = sbr.rel (0) target = $region33
    $region32: #{tpu_custom_call.1} parent=1 // pred_region
      %s75 = ssub.s32 2048, 2048
      %76 = vsyncadd [#allocation9], %s75
      %s77 = sshll.u32 [#allocation10], 4
      %s78 = int_to_ptr.vmem [resolvable:$true] %s77
      %83 = dma.hbm_to_vmem [thread:$0]  %s7, 2048, %s78, [#allocation9], 64, 64, 4
    $region33: #{tpu_custom_call.1} parent=1 // pred_fallthru
      _
    // Predicated region
    $region34: #{tpu_custom_call.1} parent=1 // pred_check
      _
    $region35: #{tpu_custom_call.1} parent=1 // pred_check_branch
      %85 = sbr.rel (0) target = $region37
    $region36: #{tpu_custom_call.1} parent=1 // pred_region
      _
    $region37: #{tpu_custom_call.1} parent=1 // pred_fallthru
      _
    // Predicated region
    $region38: #{tpu_custom_call.1} parent=1 // pred_check
      _
    $region39: #{tpu_custom_call.1} parent=1 // pred_check_branch
      %87 = sbr.rel (0) target = $region41
    $region40: #{tpu_custom_call.1} parent=1 // pred_region
      %88 = dma.done [#allocation3], 256
    $region41: #{tpu_custom_call.1} parent=1 // pred_fallthru
      _
    // Predicated region
    $region42: #{tpu_custom_call.1} parent=1 // pred_check
      _
    $region43: #{tpu_custom_call.1} parent=1 // pred_check_branch
      %90 = sbr.rel (0) target = $region45
    $region44: #{tpu_custom_call.1} parent=1 // pred_region
      %91 = dma.done [#allocation6], 2048
    $region45: #{tpu_custom_call.1} parent=1 // pred_fallthru
      _
    // Predicated region
    $region46: #{tpu_custom_call.1} parent=1 // pred_check
      _
    $region47: #{tpu_custom_call.1} parent=1 // pred_check_branch
      %93 = sbr.rel (0) target = $region49
    $region48: #{tpu_custom_call.1} parent=1 // pred_region
      %94 = dma.done [#allocation6], 1024
    $region49: #{tpu_custom_call.1} parent=1 // pred_fallthru
      _
    // Predicated region
    $region50: #{tpu_custom_call.1} parent=1 // pred_check
      _
    $region51: #{tpu_custom_call.1} parent=1 // pred_check_branch
      %96 = sbr.rel (0) target = $region53
    $region52: #{tpu_custom_call.1} parent=1 // pred_region
      %97 = dma.done [#allocation9], 1024
    $region53: #{tpu_custom_call.1} parent=1 // pred_fallthru
      _
    // Predicated region
    $region54: #{tpu_custom_call.1} parent=1 // pred_check
      _
    $region55: #{tpu_custom_call.1} parent=1 // pred_check_branch
      %99 = sbr.rel (0) target = $region57
    $region56: #{tpu_custom_call.1} parent=1 // pred_region
      %100 = dma.done [#allocation9], 2048
    $region57: #{tpu_custom_call.1} parent=1 // pred_fallthru
      _
    %v102 = vld [vmem:[#allocation2] sm:$0xff]
    %v103 = vld [vmem:[#allocation2 + $0x8] sm:$0xff]
    %v104 = vpack.c.bf16 %v103, %v102
    %v105 = vld [vmem:[#allocation5] sm:$0xff]
    %v106 = vld [vmem:[#allocation5 + $0x8] sm:$0xff]
    %v107 = vld [vmem:[#allocation5 + $0x10] sm:$0xff]
    %v108 = vld [vmem:[#allocation5 + $0x18] sm:$0xff]
    %v109 = vld [vmem:[#allocation5 + $0x20] sm:$0xff]
    %v110 = vld [vmem:[#allocation5 + $0x28] sm:$0xff]
    %v111 = vld [vmem:[#allocation5 + $0x30] sm:$0xff]
    %v112 = vld [vmem:[#allocation5 + $0x38] sm:$0xff]
    %v113 = vld [vmem:[#allocation5 + $0x40] sm:$0xff]
    %v114 = vld [vmem:[#allocation5 + $0x48] sm:$0xff]
    %v115 = vld [vmem:[#allocation5 + $0x50] sm:$0xff]
    %v116 = vld [vmem:[#allocation5 + $0x58] sm:$0xff]
    %v117 = vld [vmem:[#allocation5 + $0x60] sm:$0xff]
    %v118 = vld [vmem:[#allocation5 + $0x68] sm:$0xff]
    %v119 = vld [vmem:[#allocation5 + $0x70] sm:$0xff]
    %v120 = vld [vmem:[#allocation5 + $0x78] sm:$0xff]
    %v121 = vld [vmem:[%s2] sm:$0x3]
    %v123 = vlaneseq
    %v124 = vshrl.u32 %v123, 7
    %v125 = vsub.s32 0, %v124
    %v126 = vrot.slane %v121, %v125
    %v127 = vlaneseq
    %v128 = vshrl.u32 %v127, 7
    %v129 = vsub.s32 1, %v128
    %v130 = vrot.slane %v121, %v129
    %v149 = vunpack.c.l.b16 %v105
    %v150 = vunpack.c.h.b16 %v105
    %v151 = vunpack.c.l.b16 %v106
    %v152 = vunpack.c.h.b16 %v106
    %v153 = vunpack.c.l.b16 %v107
    %v154 = vunpack.c.h.b16 %v107
    %v155 = vunpack.c.l.b16 %v108
    %v156 = vunpack.c.h.b16 %v108
    %v157 = vunpack.c.l.b16 %v109
    %v158 = vunpack.c.h.b16 %v109
    %v159 = vunpack.c.l.b16 %v110
    %v160 = vunpack.c.h.b16 %v110
    %v161 = vunpack.c.l.b16 %v111
    %v162 = vunpack.c.h.b16 %v111
    %v163 = vunpack.c.l.b16 %v112
    %v164 = vunpack.c.h.b16 %v112
    %v165 = vunpack.c.l.b16 %v113
    %v166 = vunpack.c.h.b16 %v113
    %v167 = vunpack.c.l.b16 %v114
    %v168 = vunpack.c.h.b16 %v114
    %v169 = vunpack.c.l.b16 %v115
    %v170 = vunpack.c.h.b16 %v115
    %v171 = vunpack.c.l.b16 %v116
    %v172 = vunpack.c.h.b16 %v116
    %v173 = vunpack.c.l.b16 %v117
    %v174 = vunpack.c.h.b16 %v117
    %v175 = vunpack.c.l.b16 %v118
    %v176 = vunpack.c.h.b16 %v118
    %v177 = vunpack.c.l.b16 %v119
    %v178 = vunpack.c.h.b16 %v119
    %v179 = vunpack.c.l.b16 %v120
    %v180 = vunpack.c.h.b16 %v120
    %v181 = vpack.c.b16 %v151, %v149
    %v182 = vpack.c.b16 %v152, %v150
    %v183 = vpack.c.b16 %v155, %v153
    %v184 = vpack.c.b16 %v156, %v154
    %v185 = vpack.c.b16 %v159, %v157
    %v186 = vpack.c.b16 %v160, %v158
    %v187 = vpack.c.b16 %v163, %v161
    %v188 = vpack.c.b16 %v164, %v162
    %v189 = vpack.c.b16 %v167, %v165
    %v190 = vpack.c.b16 %v168, %v166
    %v191 = vpack.c.b16 %v171, %v169
    %v192 = vpack.c.b16 %v172, %v170
    %v193 = vpack.c.b16 %v175, %v173
    %v194 = vpack.c.b16 %v176, %v174
    %v195 = vpack.c.b16 %v179, %v177
    %v196 = vpack.c.b16 %v180, %v178
    %213 = vmatprep.subr.bf16.mxu0 %v182
    %214 = vmatpush1.bf16.msra.mxu0 %v181
    %215 = vmatprep.subr.bf16.mxu0 %v184
    %216 = vmatpush1.bf16.msra.mxu0 %v183
    %217 = vmatprep.subr.bf16.mxu0 %v186
    %218 = vmatpush1.bf16.msra.mxu0 %v185
    %219 = vmatprep.subr.bf16.mxu0 %v188
    %220 = vmatpush1.bf16.msra.mxu0 %v187
    %221 = vmatprep.subr.bf16.mxu0 %v190
    %222 = vmatpush1.bf16.msra.mxu0 %v189
    %223 = vmatprep.subr.bf16.mxu0 %v192
    %224 = vmatpush1.bf16.msra.mxu0 %v191
    %225 = vmatprep.subr.bf16.mxu0 %v194
    %226 = vmatpush1.bf16.msra.mxu0 %v193
    %227 = vmatprep.subr.bf16.mxu0 %v196
    %228 = vmatpush1.bf16.msra.mxu0 %v195
    %229 = vmatprep.subr.bf16.mxu0 0
    %230 = vmatpush1.bf16.msra.mxu0 0
    %231 = vmatprep.subr.bf16.mxu0 0
    %232 = vmatpush1.bf16.msra.mxu0 0
    %233 = vmatprep.subr.bf16.mxu0 0
    %234 = vmatpush1.bf16.msra.mxu0 0
    %235 = vmatprep.subr.bf16.mxu0 0
    %236 = vmatpush1.bf16.msra.mxu0 0
    %237 = vmatprep.subr.bf16.mxu0 0
    %238 = vmatpush1.bf16.msra.mxu0 0
    %239 = vmatprep.subr.bf16.mxu0 0
    %240 = vmatpush1.bf16.msra.mxu0 0
    %241 = vmatprep.subr.bf16.mxu0 0
    %242 = vmatpush1.bf16.msra.mxu0 0
    %243 = vmatprep.subr.bf16.mxu0 0
    %244 = vmatpush1.bf16.msra.mxu0 0
    %245 = vmatprep.mubr.bf16.mxu0 0
    %246 = vmatmul.mubr.bf16.gmra.mrb[0].mxu0 %v104
    %v247 = vpop.f32.mrb[0].mxu0
    %v248 = vadd.f32 %v126, %v247
    %v249 = vpop.f32.mrb[0].mxu0
    %v250 = vadd.f32 %v130, %v249
    %v251 = vpop.f32.mrb[0].mxu0
    %v252 = vadd.f32 %v126, %v251
    %v253 = vpop.f32.mrb[0].mxu0
    %v254 = vadd.f32 %v130, %v253
    %255 = vdwg.mxu0
    %v256 = vmax.f32 %v248, 0.0
    %v257 = vmax.f32 %v250, 0.0
    %v258 = vmax.f32 %v252, 0.0
    %v259 = vmax.f32 %v254, 0.0
    %v260 = vpack.c.bf16 %v258, %v256
    %v261 = vpack.c.bf16 %v259, %v257
    %v262 = vld [vmem:[#allocation7] sm:$0xf]
    %v263 = vld [vmem:[#allocation7 + $0x4] sm:$0xf]
    %v264 = vld [vmem:[#allocation7 + $0x8] sm:$0xf]
    %v265 = vld [vmem:[#allocation7 + $0xc] sm:$0xf]
    %v266 = vld [vmem:[#allocation7 + $0x10] sm:$0xf]
    %v267 = vld [vmem:[#allocation7 + $0x14] sm:$0xf]
    %v268 = vld [vmem:[#allocation7 + $0x18] sm:$0xf]
    %v269 = vld [vmem:[#allocation7 + $0x1c] sm:$0xf]
    %v270 = vld [vmem:[#allocation7 + $0x20] sm:$0xf]
    %v271 = vld [vmem:[#allocation7 + $0x24] sm:$0xf]
    %v272 = vld [vmem:[#allocation7 + $0x28] sm:$0xf]
    %v273 = vld [vmem:[#allocation7 + $0x2c] sm:$0xf]
    %v274 = vld [vmem:[#allocation7 + $0x30] sm:$0xf]
    %v275 = vld [vmem:[#allocation7 + $0x34] sm:$0xf]
    %v276 = vld [vmem:[#allocation7 + $0x38] sm:$0xf]
    %v277 = vld [vmem:[#allocation7 + $0x3c] sm:$0xf]
    %v278 = vld [vmem:[%s4] sm:$0x1]
    %v280 = vlaneseq
    %v281 = vshrl.u32 %v280, 7
    %v282 = vsub.s32 0, %v281
    %v283 = vrot.slane %v278, %v282
    %v301 = vunpack.c.l.b16 %v262
    %v302 = vunpack.c.l.b16 %v263
    %v303 = vunpack.c.l.b16 %v264
    %v304 = vunpack.c.l.b16 %v265
    %v305 = vunpack.c.l.b16 %v266
    %v306 = vunpack.c.l.b16 %v267
    %v307 = vunpack.c.l.b16 %v268
    %v308 = vunpack.c.l.b16 %v269
    %v309 = vunpack.c.l.b16 %v270
    %v310 = vunpack.c.l.b16 %v271
    %v311 = vunpack.c.l.b16 %v272
    %v312 = vunpack.c.l.b16 %v273
    %v313 = vunpack.c.l.b16 %v274
    %v314 = vunpack.c.l.b16 %v275
    %v315 = vunpack.c.l.b16 %v276
    %v316 = vunpack.c.l.b16 %v277
    %v317 = vpack.c.b16 %v302, %v301
    %v318 = vpack.c.b16 %v304, %v303
    %v319 = vpack.c.b16 %v306, %v305
    %v320 = vpack.c.b16 %v308, %v307
    %v321 = vpack.c.b16 %v310, %v309
    %v322 = vpack.c.b16 %v312, %v311
    %v323 = vpack.c.b16 %v314, %v313
    %v324 = vpack.c.b16 %v316, %v315
    %333 = vmatprep.subr.bf16.mxu0 0
    %334 = vmatpush1.bf16.msra.mxu0 %v317
    %335 = vmatprep.subr.bf16.mxu0 0
    %336 = vmatpush1.bf16.msra.mxu0 %v318
    %337 = vmatprep.subr.bf16.mxu0 0
    %338 = vmatpush1.bf16.msra.mxu0 %v319
    %339 = vmatprep.subr.bf16.mxu0 0
    %340 = vmatpush1.bf16.msra.mxu0 %v320
    %341 = vmatprep.subr.bf16.mxu0 0
    %342 = vmatpush1.bf16.msra.mxu0 %v321
    %343 = vmatprep.subr.bf16.mxu0 0
    %344 = vmatpush1.bf16.msra.mxu0 %v322
    %345 = vmatprep.subr.bf16.mxu0 0
    %346 = vmatpush1.bf16.msra.mxu0 %v323
    %347 = vmatprep.subr.bf16.mxu0 0
    %348 = vmatpush1.bf16.msra.mxu0 %v324
    %349 = vmatprep.subr.bf16.mxu0 0
    %350 = vmatpush1.bf16.msra.mxu0 0
    %351 = vmatprep.subr.bf16.mxu0 0
    %352 = vmatpush1.bf16.msra.mxu0 0
    %353 = vmatprep.subr.bf16.mxu0 0
    %354 = vmatpush1.bf16.msra.mxu0 0
    %355 = vmatprep.subr.bf16.mxu0 0
    %356 = vmatpush1.bf16.msra.mxu0 0
    %357 = vmatprep.subr.bf16.mxu0 0
    %358 = vmatpush1.bf16.msra.mxu0 0
    %359 = vmatprep.subr.bf16.mxu0 0
    %360 = vmatpush1.bf16.msra.mxu0 0
    %361 = vmatprep.subr.bf16.mxu0 0
    %362 = vmatpush1.bf16.msra.mxu0 0
    %363 = vmatprep.subr.bf16.mxu0 0
    %364 = vmatpush1.bf16.msra.mxu0 0
    %365 = vmatprep.mubr.bf16.mxu0 0
    %366 = vmatmul.mubr.bf16.gmra.mrb[0].mxu0 %v260
    %v367 = vpop.f32.mrb[0].mxu0
    %v368 = vadd.f32 %v283, %v367
    %v369 = vpop.f32.mrb[0].mxu0
    %v370 = vpop.f32.mrb[0].mxu0
    %v371 = vadd.f32 %v283, %v370
    %v372 = vpop.f32.mrb[0].mxu0
    %373 = vdwg.mxu0
    %v374 = vmax.f32 %v368, 0.0
    %v375 = vmax.f32 %v371, 0.0
    %v376 = vld [vmem:[#allocation8] sm:$0xf]
    %v377 = vld [vmem:[#allocation8 + $0x4] sm:$0xf]
    %v378 = vld [vmem:[#allocation8 + $0x8] sm:$0xf]
    %v379 = vld [vmem:[#allocation8 + $0xc] sm:$0xf]
    %v380 = vld [vmem:[#allocation8 + $0x10] sm:$0xf]
    %v381 = vld [vmem:[#allocation8 + $0x14] sm:$0xf]
    %v382 = vld [vmem:[#allocation8 + $0x18] sm:$0xf]
    %v383 = vld [vmem:[#allocation8 + $0x1c] sm:$0xf]
    %v384 = vld [vmem:[#allocation8 + $0x20] sm:$0xf]
    %v385 = vld [vmem:[#allocation8 + $0x24] sm:$0xf]
    %v386 = vld [vmem:[#allocation8 + $0x28] sm:$0xf]
    %v387 = vld [vmem:[#allocation8 + $0x2c] sm:$0xf]
    %v388 = vld [vmem:[#allocation8 + $0x30] sm:$0xf]
    %v389 = vld [vmem:[#allocation8 + $0x34] sm:$0xf]
    %v390 = vld [vmem:[#allocation8 + $0x38] sm:$0xf]
    %v391 = vld [vmem:[#allocation8 + $0x3c] sm:$0xf]
    %v392 = vld [vmem:[%s6] sm:$0x1]
    %v394 = vlaneseq
    %v395 = vshrl.u32 %v394, 7
    %v396 = vsub.s32 0, %v395
    %v397 = vrot.slane %v392, %v396
    %v415 = vunpack.c.l.b16 %v376
    %v416 = vunpack.c.l.b16 %v377
    %v417 = vunpack.c.l.b16 %v378
    %v418 = vunpack.c.l.b16 %v379
    %v419 = vunpack.c.l.b16 %v380
    %v420 = vunpack.c.l.b16 %v381
    %v421 = vunpack.c.l.b16 %v382
    %v422 = vunpack.c.l.b16 %v383
    %v423 = vunpack.c.l.b16 %v384
    %v424 = vunpack.c.l.b16 %v385
    %v425 = vunpack.c.l.b16 %v386
    %v426 = vunpack.c.l.b16 %v387
    %v427 = vunpack.c.l.b16 %v388
    %v428 = vunpack.c.l.b16 %v389
    %v429 = vunpack.c.l.b16 %v390
    %v430 = vunpack.c.l.b16 %v391
    %v431 = vpack.c.b16 %v416, %v415
    %v432 = vpack.c.b16 %v418, %v417
    %v433 = vpack.c.b16 %v420, %v419
    %v434 = vpack.c.b16 %v422, %v421
    %v435 = vpack.c.b16 %v424, %v423
    %v436 = vpack.c.b16 %v426, %v425
    %v437 = vpack.c.b16 %v428, %v427
    %v438 = vpack.c.b16 %v430, %v429
    %447 = vmatprep.subr.bf16.mxu0 0
    %448 = vmatpush1.bf16.msra.mxu0 %v431
    %449 = vmatprep.subr.bf16.mxu0 0
    %450 = vmatpush1.bf16.msra.mxu0 %v432
    %451 = vmatprep.subr.bf16.mxu0 0
    %452 = vmatpush1.bf16.msra.mxu0 %v433
    %453 = vmatprep.subr.bf16.mxu0 0
    %454 = vmatpush1.bf16.msra.mxu0 %v434
    %455 = vmatprep.subr.bf16.mxu0 0
    %456 = vmatpush1.bf16.msra.mxu0 %v435
    %457 = vmatprep.subr.bf16.mxu0 0
    %458 = vmatpush1.bf16.msra.mxu0 %v436
    %459 = vmatprep.subr.bf16.mxu0 0
    %460 = vmatpush1.bf16.msra.mxu0 %v437
    %461 = vmatprep.subr.bf16.mxu0 0
    %462 = vmatpush1.bf16.msra.mxu0 %v438
    %463 = vmatprep.subr.bf16.mxu0 0
    %464 = vmatpush1.bf16.msra.mxu0 0
    %465 = vmatprep.subr.bf16.mxu0 0
    %466 = vmatpush1.bf16.msra.mxu0 0
    %467 = vmatprep.subr.bf16.mxu0 0
    %468 = vmatpush1.bf16.msra.mxu0 0
    %469 = vmatprep.subr.bf16.mxu0 0
    %470 = vmatpush1.bf16.msra.mxu0 0
    %471 = vmatprep.subr.bf16.mxu0 0
    %472 = vmatpush1.bf16.msra.mxu0 0
    %473 = vmatprep.subr.bf16.mxu0 0
    %474 = vmatpush1.bf16.msra.mxu0 0
    %475 = vmatprep.subr.bf16.mxu0 0
    %476 = vmatpush1.bf16.msra.mxu0 0
    %477 = vmatprep.subr.bf16.mxu0 0
    %478 = vmatpush1.bf16.msra.mxu0 0
    %479 = vmatprep.mubr.bf16.mxu0 0
    %480 = vmatmul.mubr.bf16.gmra.mrb[0].mxu0 %v261
    %v481 = vpop.f32.mrb[0].mxu0
    %v482 = vadd.f32 %v397, %v481
    %v483 = vpop.f32.mrb[0].mxu0
    %v484 = vpop.f32.mrb[0].mxu0
    %v485 = vadd.f32 %v397, %v484
    %v486 = vpop.f32.mrb[0].mxu0
    %487 = vdwg.mxu0
    %v488 = vmax.f32 %v482, 0.0
    %v489 = vmax.f32 %v485, 0.0
    %v490 = vpack.c.bf16 %v375, %v374
    %v491 = vpack.c.bf16 %v489, %v488
    %v492 = vld [vmem:[#allocation10] sm:$0xf]
    %v493 = vld [vmem:[#allocation10 + $0x4] sm:$0xf]
    %v494 = vld [vmem:[#allocation10 + $0x8] sm:$0xf]
    %v495 = vld [vmem:[#allocation10 + $0xc] sm:$0xf]
    %v496 = vld [vmem:[#allocation10 + $0x10] sm:$0xf]
    %v497 = vld [vmem:[#allocation10 + $0x14] sm:$0xf]
    %v498 = vld [vmem:[#allocation10 + $0x18] sm:$0xf]
    %v499 = vld [vmem:[#allocation10 + $0x1c] sm:$0xf]
    %v500 = vld [vmem:[#allocation10 + $0x20] sm:$0xf]
    %v501 = vld [vmem:[#allocation10 + $0x24] sm:$0xf]
    %v502 = vld [vmem:[#allocation10 + $0x28] sm:$0xf]
    %v503 = vld [vmem:[#allocation10 + $0x2c] sm:$0xf]
    %v504 = vld [vmem:[#allocation10 + $0x30] sm:$0xf]
    %v505 = vld [vmem:[#allocation10 + $0x34] sm:$0xf]
    %v506 = vld [vmem:[#allocation10 + $0x38] sm:$0xf]
    %v507 = vld [vmem:[#allocation10 + $0x3c] sm:$0xf]
    %v508 = vld [vmem:[#allocation10 + $0x40] sm:$0xf]
    %v509 = vld [vmem:[#allocation10 + $0x44] sm:$0xf]
    %v510 = vld [vmem:[#allocation10 + $0x48] sm:$0xf]
    %v511 = vld [vmem:[#allocation10 + $0x4c] sm:$0xf]
    %v512 = vld [vmem:[#allocation10 + $0x50] sm:$0xf]
    %v513 = vld [vmem:[#allocation10 + $0x54] sm:$0xf]
    %v514 = vld [vmem:[#allocation10 + $0x58] sm:$0xf]
    %v515 = vld [vmem:[#allocation10 + $0x5c] sm:$0xf]
    %v516 = vld [vmem:[#allocation10 + $0x60] sm:$0xf]
    %v517 = vld [vmem:[#allocation10 + $0x64] sm:$0xf]
    %v518 = vld [vmem:[#allocation10 + $0x68] sm:$0xf]
    %v519 = vld [vmem:[#allocation10 + $0x6c] sm:$0xf]
    %v520 = vld [vmem:[#allocation10 + $0x70] sm:$0xf]
    %v521 = vld [vmem:[#allocation10 + $0x74] sm:$0xf]
    %v522 = vld [vmem:[#allocation10 + $0x78] sm:$0xf]
    %v523 = vld [vmem:[#allocation10 + $0x7c] sm:$0xf]
    %v524 = vld [vmem:[%s8] sm:$0x1]
    %v526 = vlaneseq
    %v527 = vshrl.u32 %v526, 7
    %v528 = vsub.s32 0, %v527
    %v529 = vrot.slane %v524, %v528
    %v563 = vunpack.c.l.b16 %v492
    %v564 = vunpack.c.l.b16 %v493
    %v565 = vunpack.c.l.b16 %v494
    %v566 = vunpack.c.l.b16 %v495
    %v567 = vunpack.c.l.b16 %v496
    %v568 = vunpack.c.l.b16 %v497
    %v569 = vunpack.c.l.b16 %v498
    %v570 = vunpack.c.l.b16 %v499
    %v571 = vunpack.c.l.b16 %v500
    %v572 = vunpack.c.l.b16 %v501
    %v573 = vunpack.c.l.b16 %v502
    %v574 = vunpack.c.l.b16 %v503
    %v575 = vunpack.c.l.b16 %v504
    %v576 = vunpack.c.l.b16 %v505
    %v577 = vunpack.c.l.b16 %v506
    %v578 = vunpack.c.l.b16 %v507
    %v579 = vunpack.c.l.b16 %v508
    %v580 = vunpack.c.l.b16 %v509
    %v581 = vunpack.c.l.b16 %v510
    %v582 = vunpack.c.l.b16 %v511
    %v583 = vunpack.c.l.b16 %v512
    %v584 = vunpack.c.l.b16 %v513
    %v585 = vunpack.c.l.b16 %v514
    %v586 = vunpack.c.l.b16 %v515
    %v587 = vunpack.c.l.b16 %v516
    %v588 = vunpack.c.l.b16 %v517
    %v589 = vunpack.c.l.b16 %v518
    %v590 = vunpack.c.l.b16 %v519
    %v591 = vunpack.c.l.b16 %v520
    %v592 = vunpack.c.l.b16 %v521
    %v593 = vunpack.c.l.b16 %v522
    %v594 = vunpack.c.l.b16 %v523
    %v595 = vpack.c.b16 %v564, %v563
    %v596 = vpack.c.b16 %v566, %v565
    %v597 = vpack.c.b16 %v568, %v567
    %v598 = vpack.c.b16 %v570, %v569
    %v599 = vpack.c.b16 %v572, %v571
    %v600 = vpack.c.b16 %v574, %v573
    %v601 = vpack.c.b16 %v576, %v575
    %v602 = vpack.c.b16 %v578, %v577
    %v603 = vpack.c.b16 %v580, %v579
    %v604 = vpack.c.b16 %v582, %v581
    %v605 = vpack.c.b16 %v584, %v583
    %v606 = vpack.c.b16 %v586, %v585
    %v607 = vpack.c.b16 %v588, %v587
    %v608 = vpack.c.b16 %v590, %v589
    %v609 = vpack.c.b16 %v592, %v591
    %v610 = vpack.c.b16 %v594, %v593
    %627 = vmatprep.subr.bf16.mxu0 0
    %628 = vmatpush1.bf16.msra.mxu0 %v595
    %629 = vmatprep.subr.bf16.mxu0 0
    %630 = vmatpush1.bf16.msra.mxu0 %v596
    %631 = vmatprep.subr.bf16.mxu0 0
    %632 = vmatpush1.bf16.msra.mxu0 %v597
    %633 = vmatprep.subr.bf16.mxu0 0
    %634 = vmatpush1.bf16.msra.mxu0 %v598
    %635 = vmatprep.subr.bf16.mxu0 0
    %636 = vmatpush1.bf16.msra.mxu0 %v599
    %637 = vmatprep.subr.bf16.mxu0 0
    %638 = vmatpush1.bf16.msra.mxu0 %v600
    %639 = vmatprep.subr.bf16.mxu0 0
    %640 = vmatpush1.bf16.msra.mxu0 %v601
    %641 = vmatprep.subr.bf16.mxu0 0
    %642 = vmatpush1.bf16.msra.mxu0 %v602
    %643 = vmatprep.subr.bf16.mxu0 0
    %644 = vmatpush1.bf16.msra.mxu0 %v603
    %645 = vmatprep.subr.bf16.mxu0 0
    %646 = vmatpush1.bf16.msra.mxu0 %v604
    %647 = vmatprep.subr.bf16.mxu0 0
    %648 = vmatpush1.bf16.msra.mxu0 %v605
    %649 = vmatprep.subr.bf16.mxu0 0
    %650 = vmatpush1.bf16.msra.mxu0 %v606
    %651 = vmatprep.subr.bf16.mxu0 0
    %652 = vmatpush1.bf16.msra.mxu0 %v607
    %653 = vmatprep.subr.bf16.mxu0 0
    %654 = vmatpush1.bf16.msra.mxu0 %v608
    %655 = vmatprep.subr.bf16.mxu0 0
    %656 = vmatpush1.bf16.msra.mxu0 %v609
    %657 = vmatprep.subr.bf16.mxu0 0
    %658 = vmatpush1.bf16.msra.mxu0 %v610
    %659 = vmatprep.mubr.bf16.mxu0 %v491
    %660 = vmatmul.mubr.bf16.gmra.mrb[0].mxu0 %v490
    %v661 = vpop.f32.mrb[0].mxu0
    %v662 = vadd.f32 %v529, %v661
    %v663 = vpop.f32.mrb[0].mxu0
    %v664 = vpop.f32.mrb[0].mxu0
    %v665 = vadd.f32 %v529, %v664
    %v666 = vpop.f32.mrb[0].mxu0
    %667 = vdwg.mxu0
    %668 = vst [vmem:[#allocation11] sm:$0xff] %v662
    %669 = vst [vmem:[#allocation11 + $0x8] sm:$0xff] %v665
    // Predicated region
    $region58: #{tpu_custom_call.1} parent=1 // pred_check
      _
    $region59: #{tpu_custom_call.1} parent=1 // pred_check_branch
      %671 = sbr.rel (0) target = $region61
    $region60: #{tpu_custom_call.1} parent=1 // pred_region
      %s673 = ssub.s32 256, 256
      %674 = vsyncadd [#allocation4], %s673
      %s675 = sshll.u32 [#allocation11], 4
      %s676 = int_to_ptr.vmem [resolvable:$true] %s675
      %681 = dma.vmem_to_hbm [thread:$0]  %s676, 256, %s9, [#allocation4], 128, 128, 8
    $region61: #{tpu_custom_call.1} parent=1 // pred_fallthru
      _
    // Predicated region
    $region62: #{tpu_custom_call.1} parent=1 // pred_check
      _
    $region63: #{tpu_custom_call.1} parent=1 // pred_check_branch
      %683 = sbr.rel (0) target = $region65
    $region64: #{tpu_custom_call.1} parent=1 // pred_region
      %684 = dma.done [#allocation4], 256
    $region65: #{tpu_custom_call.1} parent=1 // pred_fallthru
      _
    %685 = vsyncpa [#allocation3], 1
    %686 = vsyncpa [#allocation6], 1
    %687 = vsyncpa [#allocation9], 1
    %688 = vsyncpa [#allocation4], 1

</llo_original>
